<compile_context>
chip_gen: v5e
topology: v5e:2x2
jax: 0.10.0
libtpu: 0.0.40
codegen_flags: <defaults>
</compile_context>

<pallas_src>
import jax
import jax.numpy as jnp
from jax.experimental import pallas as pl
from jax.experimental.pallas import tpu as pltpu


def _avgmax_conv_kernel(x_ref, wa_ref, wm_ref, b_ref, o_ref):
    # x_ref : (C, T, TILE_S)  -- spatial tile on the lane (minor) dim
    # wa_ref: (C, C) conv weight for the avg branch
    # wm_ref: (C, C) conv weight for the max branch
    # b_ref : (C, 1) bias
    # o_ref : (C, TILE_S)
    x = x_ref[...].astype(jnp.float32)                 # (C, T, S_t)
    inv_t = jnp.float32(1.0 / x_ref.shape[1])
    avg = jnp.sum(x, axis=1) * inv_t                   # (C, S_t) dense sublane reduce
    mx = jnp.max(x, axis=1)                            # (C, S_t)
    out = jnp.dot(wa_ref[...], avg, preferred_element_type=jnp.float32)
    out = out + jnp.dot(wm_ref[...], mx, preferred_element_type=jnp.float32)
    out = out + b_ref[...]                             # (C,1) broadcasts over lanes
    o_ref[...] = out.astype(o_ref.dtype)


def _pick_tile(s, target):
    """Largest divisor of s that is a multiple of 128 and <= target; fallback
    to the largest divisor of s <= target."""
    best = 0
    t = 128
    while t <= min(s, target):
        if s % t == 0:
            best = t
        t += 128
    if best:
        return best
    for d in range(min(s, target), 0, -1):
        if s % d == 0:
            return d
    return 1


def avgmax_pool3d(x, weight, bias, *, max_tile_s=1024):
    """x: (B, C, H, D, W, T); weight: (C, 2C, 1, 1, 1); bias: (C,)."""
    B, C, H, D, W, T = x.shape
    S = H * D * W
    tile_s = _pick_tile(S, max_tile_s)
    n_s = S // tile_s

    # Lane-dense relayout: (B, C, S, T) -> (B, C, T, S).  Spatial S becomes the
    # lane dim of every block; the reduction axis T sits on sublanes.
    x_r = jnp.transpose(x.reshape(B, C, S, T), (0, 1, 3, 2))

    # 1x1x1 conv: weight (C, 2C) split so no in-kernel concat is needed.
    # torch cat order is [avg, max] along channels.
    w2 = weight.reshape(C, 2 * C).astype(jnp.float32)
    w_avg = w2[:, :C]                                  # (C, C)
    w_max = w2[:, C:]                                  # (C, C)
    b_r = bias.reshape(C, 1).astype(jnp.float32)

    itemsize = x.dtype.itemsize
    in_block_bytes = C * T * tile_s * itemsize
    out_block_bytes = C * tile_s * itemsize
    # 2x double-buffered input + 2x output + weights, with headroom; keep well
    # under v7x's 64 MiB physical VMEM.
    vmem_limit = int(min(
        max(4 * (in_block_bytes + out_block_bytes) + (4 << 20), 16 << 20),
        48 << 20))

    cost = pl.CostEstimate(
        flops=int(2 * B * S * C * (T + 2 * C)),
        transcendentals=0,
        bytes_accessed=int(B * C * S * T * itemsize + B * C * S * itemsize),
    )

    out_flat = pl.pallas_call(
        _avgmax_conv_kernel,
        out_shape=jax.ShapeDtypeStruct((B, C, S), x.dtype),
        grid_spec=pltpu.PrefetchScalarGridSpec(
            num_scalar_prefetch=0,
            grid=(B, n_s),
            in_specs=[
                pl.BlockSpec((None, C, T, tile_s), lambda b, i: (b, 0, 0, i)),
                pl.BlockSpec((C, C), lambda b, i: (0, 0)),
                pl.BlockSpec((C, C), lambda b, i: (0, 0)),
                pl.BlockSpec((C, 1), lambda b, i: (0, 0)),
            ],
            out_specs=pl.BlockSpec((None, C, tile_s), lambda b, i: (b, 0, i)),
        ),
        compiler_params=pltpu.CompilerParams(
            dimension_semantics=("parallel", "parallel"),
            vmem_limit_bytes=vmem_limit,
        ),
        cost_estimate=cost,
    )(x_r, w_avg, w_max, b_r)

    # (B, C, S) -> (B, C, H, D, W): free reshape, no output transpose needed.
    return out_flat.reshape(B, C, H, D, W)


def _reference(x, weight, bias):
    # Pure-JAX reference mirroring the PyTorch module.
    B, C, H, D, W, T = x.shape
    avg = jnp.mean(x, axis=-1)                         # (B, C, H, D, W)
    mx = jnp.max(x, axis=-1)                           # (B, C, H, D, W)
    combined = jnp.concatenate([avg, mx], axis=1)      # (B, 2C, H, D, W)
    w2 = weight.reshape(C, 2 * C)                      # (C_out, C_in)
    out = jnp.einsum("oc,bchdw->bohdw", w2, combined) + bias.reshape(1, C, 1, 1, 1)
    return out


if __name__ == "__main__":
    key = jax.random.PRNGKey(0)
    B, C, H, D, W, T = 2, 4, 16, 16, 16, 8

    kx, kw, kb = jax.random.split(key, 3)
    x = jax.random.normal(kx, (B, C, H, D, W, T), dtype=jnp.float32)

    # Deterministic "conv" parameters (Conv3d(2C -> C, kernel_size=1) shapes).
    fan_in = 2 * C
    bound = 1.0 / (fan_in ** 0.5)
    weight = jax.random.uniform(kw, (C, 2 * C, 1, 1, 1), jnp.float32, -bound, bound)
    bias = jax.random.uniform(kb, (C,), jnp.float32, -bound, bound)

    out = avgmax_pool3d(x, weight, bias)
    out = jax.block_until_ready(out)

    ref = _reference(x, weight, bias)
    assert out.shape == (B, C, H, D, W)
    assert jnp.allclose(out, ref, atol=1e-4, rtol=1e-4), float(jnp.max(jnp.abs(out - ref)))

    print("KERNEL_OK")
</pallas_src>

<mosaic_0001>
module attributes {stable_mosaic.version = 11 : i64} {
  func.func @_avgmax_conv_kernel(%arg0: i32, %arg1: i32, %arg2: memref<1x4x8x1024xf32, #tpu.memory_space<vmem>>, %arg3: memref<4x4xf32, #tpu.memory_space<vmem>>, %arg4: memref<4x4xf32, #tpu.memory_space<vmem>>, %arg5: memref<4x1xf32, #tpu.memory_space<vmem>>, %arg6: memref<1x4x1024xf32, #tpu.memory_space<vmem>>) attributes {dimension_semantics = [#tpu.dimension_semantics<parallel>, #tpu.dimension_semantics<parallel>], iteration_bounds = array<i64: 2, 4>, scalar_prefetch = 0 : i64, scratch_operands = 0 : i64, tpu.core_type = #tpu.core_type<tc>, window_params = [{transform_indices = @transform_0, window_bounds = array<i64: 1, 4, 8, 1024>}, {pipeline_mode = #tpu.pipeline_mode<synchronous>, transform_indices = @transform_1, window_bounds = array<i64: 4, 4>}, {pipeline_mode = #tpu.pipeline_mode<synchronous>, transform_indices = @transform_2, window_bounds = array<i64: 4, 4>}, {pipeline_mode = #tpu.pipeline_mode<synchronous>, transform_indices = @transform_3, window_bounds = array<i64: 4, 1>}, {transform_indices = @transform_4, window_bounds = array<i64: 1, 4, 1024>}]} {
    %c0 = arith.constant 0 : index
    %c0_0 = arith.constant 0 : index
    %c0_1 = arith.constant 0 : index
    %c0_2 = arith.constant 0 : index
    %0 = vector.load %arg2[%c0, %c0_0, %c0_1, %c0_2] : memref<1x4x8x1024xf32, #tpu.memory_space<vmem>>, vector<1x4x8x1024xf32>
    %1 = vector.shape_cast %0 : vector<1x4x8x1024xf32> to vector<4x8x1024xf32>
    %cst = arith.constant dense<0.000000e+00> : vector<4x1024xf32>
    %2 = vector.multi_reduction <add>, %1, %cst [1] : vector<4x8x1024xf32> to vector<4x1024xf32>
    %cst_3 = arith.constant 1.250000e-01 : f32
    %3 = vector.broadcast %cst_3 : f32 to vector<4x1024xf32>
    %4 = arith.mulf %2, %3 : vector<4x1024xf32>
    %cst_4 = arith.constant dense<0xFF800000> : vector<4x1024xf32>
    %5 = vector.multi_reduction <maximumf>, %1, %cst_4 [1] : vector<4x8x1024xf32> to vector<4x1024xf32>
    %c0_5 = arith.constant 0 : index
    %c0_6 = arith.constant 0 : index
    %6 = vector.load %arg3[%c0_5, %c0_6] : memref<4x4xf32, #tpu.memory_space<vmem>>, vector<4x4xf32>
    %cst_7 = arith.constant dense<0.000000e+00> : vector<4x1024xf32>
    %7 = tpu.matmul %6, %4, %cst_7 {dimension_numbers = #tpu.dot_dimension_numbers<[1], [0], [0], [1], [0, 0, 1, 1], [], []>} : vector<4x4xf32>, vector<4x1024xf32>, vector<4x1024xf32> -> vector<4x1024xf32>
    %c0_8 = arith.constant 0 : index
    %c0_9 = arith.constant 0 : index
    %8 = vector.load %arg4[%c0_8, %c0_9] : memref<4x4xf32, #tpu.memory_space<vmem>>, vector<4x4xf32>
    %cst_10 = arith.constant dense<0.000000e+00> : vector<4x1024xf32>
    %9 = tpu.matmul %8, %5, %cst_10 {dimension_numbers = #tpu.dot_dimension_numbers<[1], [0], [0], [1], [0, 0, 1, 1], [], []>} : vector<4x4xf32>, vector<4x1024xf32>, vector<4x1024xf32> -> vector<4x1024xf32>
    %10 = arith.addf %7, %9 : vector<4x1024xf32>
    %c0_11 = arith.constant 0 : index
    %c0_12 = arith.constant 0 : index
    %11 = vector.load %arg5[%c0_11, %c0_12] : memref<4x1xf32, #tpu.memory_space<vmem>>, vector<4x1xf32>
    %12 = vector.broadcast %11 : vector<4x1xf32> to vector<4x1024xf32>
    %13 = arith.addf %10, %12 : vector<4x1024xf32>
    %c0_13 = arith.constant 0 : index
    %c0_14 = arith.constant 0 : index
    %c0_15 = arith.constant 0 : index
    %14 = vector.load %arg6[%c0_13, %c0_14, %c0_15] : memref<1x4x1024xf32, #tpu.memory_space<vmem>>, vector<1x4x1024xf32>
    %15 = vector.shape_cast %14 : vector<1x4x1024xf32> to vector<4x1024xf32>
    %16 = vector.shape_cast %13 : vector<4x1024xf32> to vector<1x4x1024xf32>
    tpu.vector_store %arg6[%c0_13, %c0_14, %c0_15], %16 {strides = array<i32>} : memref<1x4x1024xf32, #tpu.memory_space<vmem>>, vector<1x4x1024xf32>,
    return
  }
  func.func @transform_0(%arg0: i32, %arg1: i32) -> (i32, i32, i32, i32) {
    %c0_i32 = arith.constant 0 : i32
    %c0_i32_0 = arith.constant 0 : i32
    %c0_i32_1 = arith.constant 0 : i32
    return %arg0, %c0_i32, %c0_i32_0, %arg1 : i32, i32, i32, i32
  }
  func.func @transform_1(%arg0: i32, %arg1: i32) -> (i32, i32) {
    %c0_i32 = arith.constant 0 : i32
    %c0_i32_0 = arith.constant 0 : i32
    %c0_i32_1 = arith.constant 0 : i32
    return %c0_i32, %c0_i32_0 : i32, i32
  }
  func.func @transform_2(%arg0: i32, %arg1: i32) -> (i32, i32) {
    %c0_i32 = arith.constant 0 : i32
    %c0_i32_0 = arith.constant 0 : i32
    %c0_i32_1 = arith.constant 0 : i32
    return %c0_i32, %c0_i32_0 : i32, i32
  }
  func.func @transform_3(%arg0: i32, %arg1: i32) -> (i32, i32) {
    %c0_i32 = arith.constant 0 : i32
    %c0_i32_0 = arith.constant 0 : i32
    %c0_i32_1 = arith.constant 0 : i32
    return %c0_i32, %c0_i32_0 : i32, i32
  }
  func.func @transform_4(%arg0: i32, %arg1: i32) -> (i32, i32, i32) {
    %c0_i32 = arith.constant 0 : i32
    %c0_i32_0 = arith.constant 0 : i32
    return %arg0, %c0_i32, %arg1 : i32, i32, i32
  }
}

</mosaic_0001>

<llo_original>
// kernel: tpu_custom_call.1
$region0: #{tpu_custom_call.1}
  #allocation0 [shape = 'u32[]', space=smem, size = 0x4, offset = 0x4, fixed_abs, tag = 'smem constant byte address 0x4 - core index']
  #allocation1 [shape = 'u32[72,128]{1,0:T(1,128)}', space=vmem, size = 0x9000, scoped, tag = 'internal scratch']
  %s0 = inlined_call_operand.hbm [shape: f32[2,4,8,4096], index: 0, kind: input, shape index: {}]
  %s1 = inlined_call_operand.vmem [shape: f32[4,4], index: 1, kind: input, shape index: {}]
  %s2 = inlined_call_operand.hbm [shape: f32[4,4], index: 2, kind: input, shape index: {}]
  %s3 = inlined_call_operand.vmem [shape: f32[4,1], index: 3, kind: input, shape index: {}]
  %s4 = inlined_call_operand.hbm [shape: f32[2,4,4096], index: 4, kind: output, shape index: {}]
  %s5 = sld [smem:[#allocation0]]
  $region57: #{tpu_custom_call.1} parent=0
    _
  %s7 = ssub.s32 1, %s5
  %s8 = scalar_select 0, %s7, %s5
  $region1: #{tpu_custom_call.1} parent=0
    #allocation2 [shape = 'u8[262144]{0}', space=vmem, size = 0x40000, scoped, tag = 'input window, operand 0']
    #allocation3 [shape = 's32[2]{0}', space=sflag, size = 0x8, scoped, tag = 'scoped memory for tpu_custom_call.1']
    #allocation4 [shape = 's32[2]{0}', space=sflag, size = 0x8, scoped, tag = 'scoped memory for tpu_custom_call.1']
    #allocation5 [shape = 'u8[2048]{0}', space=vmem, size = 0x800, scoped, tag = 'input window, operand 2, single buffered']
    #allocation6 [shape = 's32[1]{0}', space=sflag, size = 0x4, scoped, tag = 'scoped memory for tpu_custom_call.1']
    #allocation7 [shape = 'u8[32768]{0}', space=vmem, size = 0x8000, scoped, tag = 'output window, operand 0']
    %9 = vsyncpa [#allocation3], 0
    %s10 = scalar_lea.sflag [#allocation3], 1
    %11 = vsyncpa %s10, 0
    %12 = vsyncpa [#allocation6], 0
    %13 = vsyncpa [#allocation4], 0
    %s14 = scalar_lea.sflag [#allocation4], 1
    %15 = vsyncpa %s14, 0
    loop: start=0, step=1, limit=10
    $region2: #{tpu_custom_call.1} parent=1 // loop_pre_header
      _
    $region3: #{tpu_custom_call.1} parent=1 // loop_header
      %s17 = sphi 0, %s21
      %p18 = scmp.ge.s32.totalorder %s17, 10
      %s24 = sphi 0, %s36
      %s25 = sphi 0, %s32
      %s26 = sphi 0, %s24
      %s27 = sphi 0, %s25
      %s28 = sphi 0, %s26
      %s29 = sphi 0, %s27
      %s41 = sphi 0, %s43
      %s44 = sphi 0, %s41
      %s45 = sphi 0, %s44
      %s61 = sphi 0, %s45
      %s65 = sphi 0, %s65
      %s67 = sphi 0, %s65
      %s68 = sphi 0, %s67
      %s82 = sphi 0, %s68
      %s86 = sphi 0, %s86
      %s88 = sphi 0, %s86
      %s89 = sphi 0, %s88
      %s103 = sphi 0, %s89
      %s107 = sphi 0, %s107
      %s109 = sphi 0, %s107
      %s110 = sphi 0, %s109
      %s124 = sphi 0, %s110
      %s132 = sphi 0, %s134
      %s135 = sphi 0, %s132
      %s136 = sphi 0, %s135
      %s152 = sphi 0, %s136
    $region4: #{tpu_custom_call.1} parent=1 // loop_header_branch
      %20 = sbr.rel (%p18) target = $region8
    $region5: #{tpu_custom_call.1} parent=1 // loop_body
      %s22 = ssub.s32 %s17, 1
      %s23 = ssub.s32 %s17, 2
      %s30 = sadd.s32 1, %s25
      %p31 = scmp.ge.s32.totalorder %s30, 4
      %s32 = scalar_select %p31, 0, %s30
      %s33 = sadd.s32 1, %s24
      %s34 = scalar_select %p31, %s33, %s24
      %p35 = scmp.ge.s32.totalorder %s34, 2
      %s36 = scalar_select %p35, 0, %s34
      %s37 = ssub.s32 %s24, %s36
      %s38 = ssub.s32 %s25, %s32
      %s39 = sor.u32 %s37, %s38
      %p40 = scmp.eq.s32.totalorder %s39, 0
      %s42 = sadd.s32 %s41, 1
      %s43 = scalar_select %p40, %s41, %s42
      %p46 = pneg %p40
      %p47 = scmp.eq.s32.totalorder %s17, 7
      %p48 = por %p46, %p47
      %p49 = scmp.ne.s32.totalorder %s41, %s44
      %p50 = scmp.eq.s32.totalorder %s17, 0
      %p51 = por %p49, %p50
      %p52 = scmp.ne.s32.totalorder %s41, %s44
      %p53 = scmp.eq.s32.totalorder %s22, 7
      %p54 = por %p52, %p53
      %p55 = scmp.ne.s32.totalorder %s44, %s45
      %p56 = scmp.eq.s32.totalorder %s22, 0
      %p57 = por %p55, %p56
      %p58 = scmp.ne.s32.totalorder %s44, %s45
      %p59 = scmp.eq.s32.totalorder %s23, 7
      %p60 = por %p58, %p59
      %p62 = scmp.ne.s32.totalorder %s45, %s61
      %p63 = scmp.eq.s32.totalorder %s23, 0
      %p64 = por %p62, %p63
      %s66 = sadd.s32 %s65, 1
      %p69 = scmp.eq.s32.totalorder %s17, 7
      %p70 = scmp.ne.s32.totalorder %s65, %s67
      %p71 = scmp.eq.s32.totalorder %s17, 0
      %p72 = por %p70, %p71
      %p73 = scmp.ne.s32.totalorder %s65, %s67
      %p74 = scmp.eq.s32.totalorder %s22, 7
      %p75 = por %p73, %p74
      %p76 = scmp.ne.s32.totalorder %s67, %s68
      %p77 = scmp.eq.s32.totalorder %s22, 0
      %p78 = por %p76, %p77
      %p79 = scmp.ne.s32.totalorder %s67, %s68
      %p80 = scmp.eq.s32.totalorder %s23, 7
      %p81 = por %p79, %p80
      %p83 = scmp.ne.s32.totalorder %s68, %s82
      %p84 = scmp.eq.s32.totalorder %s23, 0
      %p85 = por %p83, %p84
      %s87 = sadd.s32 %s86, 1
      %p90 = scmp.eq.s32.totalorder %s17, 7
      %p91 = scmp.ne.s32.totalorder %s86, %s88
      %p92 = scmp.eq.s32.totalorder %s17, 0
      %p93 = por %p91, %p92
      %p94 = scmp.ne.s32.totalorder %s86, %s88
      %p95 = scmp.eq.s32.totalorder %s22, 7
      %p96 = por %p94, %p95
      %p97 = scmp.ne.s32.totalorder %s88, %s89
      %p98 = scmp.eq.s32.totalorder %s22, 0
      %p99 = por %p97, %p98
      %p100 = scmp.ne.s32.totalorder %s88, %s89
      %p101 = scmp.eq.s32.totalorder %s23, 7
      %p102 = por %p100, %p101
      %p104 = scmp.ne.s32.totalorder %s89, %s103
      %p105 = scmp.eq.s32.totalorder %s23, 0
      %p106 = por %p104, %p105
      %s108 = sadd.s32 %s107, 1
      %p111 = scmp.eq.s32.totalorder %s17, 7
      %p112 = scmp.ne.s32.totalorder %s107, %s109
      %p113 = scmp.eq.s32.totalorder %s17, 0
      %p114 = por %p112, %p113
      %p115 = scmp.ne.s32.totalorder %s107, %s109
      %p116 = scmp.eq.s32.totalorder %s22, 7
      %p117 = por %p115, %p116
      %p118 = scmp.ne.s32.totalorder %s109, %s110
      %p119 = scmp.eq.s32.totalorder %s22, 0
      %p120 = por %p118, %p119
      %p121 = scmp.ne.s32.totalorder %s109, %s110
      %p122 = scmp.eq.s32.totalorder %s23, 7
      %p123 = por %p121, %p122
      %p125 = scmp.ne.s32.totalorder %s110, %s124
      %p126 = scmp.eq.s32.totalorder %s23, 0
      %p127 = por %p125, %p126
      %s128 = ssub.s32 %s24, %s36
      %s129 = ssub.s32 %s25, %s32
      %s130 = sor.u32 %s128, %s129
      %p131 = scmp.eq.s32.totalorder %s130, 0
      %s133 = sadd.s32 %s132, 1
      %s134 = scalar_select %p131, %s132, %s133
      %p137 = pneg %p131
      %p138 = scmp.eq.s32.totalorder %s17, 7
      %p139 = por %p137, %p138
      %p140 = scmp.ne.s32.totalorder %s132, %s135
      %p141 = scmp.eq.s32.totalorder %s17, 0
      %p142 = por %p140, %p141
      %p143 = scmp.ne.s32.totalorder %s132, %s135
      %p144 = scmp.eq.s32.totalorder %s22, 7
      %p145 = por %p143, %p144
      %p146 = scmp.ne.s32.totalorder %s135, %s136
      %p147 = scmp.eq.s32.totalorder %s22, 0
      %p148 = por %p146, %p147
      %p149 = scmp.ne.s32.totalorder %s135, %s136
      %p150 = scmp.eq.s32.totalorder %s23, 7
      %p151 = por %p149, %p150
      %p153 = scmp.ne.s32.totalorder %s136, %s152
      %p154 = scmp.eq.s32.totalorder %s23, 0
      %p155 = por %p153, %p154
      %p156 = scmp.le.s32.totalorder 1, %s17
      %p157 = scmp.lt.s32.totalorder %s17, 9
      %p158 = pnand %p156, %p157
      %p159 = pneg %p158
      // Predicated region
      $region9: #{tpu_custom_call.1} parent=5 // pred_check
        _
      $region10: #{tpu_custom_call.1} parent=5 // pred_check_branch
        %161 = sbr.rel (%p158) target = $region12
      $region11: #{tpu_custom_call.1} parent=5 // pred_region
        %s162 = ssub.s32 %s17, 1
        // Predicated region
        $region13: #{tpu_custom_call.1} parent=11 // pred_check
          %p163 = pneg %p78
        $region14: #{tpu_custom_call.1} parent=11 // pred_check_branch
          %165 = sbr.rel (%p163) target = $region16
        $region15: #{tpu_custom_call.1} parent=11 // pred_region
          _
        $region16: #{tpu_custom_call.1} parent=11 // pred_fallthru
          _
        // Predicated region
        $region17: #{tpu_custom_call.1} parent=11 // pred_check
          %p166 = pneg %p99
        $region18: #{tpu_custom_call.1} parent=11 // pred_check_branch
          %168 = sbr.rel (%p166) target = $region20
        $region19: #{tpu_custom_call.1} parent=11 // pred_region
          %170 = vsyncadd [#allocation6], 0
          %s172 = sshll.u32 %s2, 4
          %s173 = int_to_ptr.hbm [resolvable:$true] %s172
          %s174 = sshll.u32 [#allocation5], 4
          %s175 = int_to_ptr.vmem [resolvable:$true] %s174
          %177 = dma.hbm_to_vmem [thread:$0]  %s173, 64, %s175, [#allocation6]
        $region20: #{tpu_custom_call.1} parent=11 // pred_fallthru
          _
        // Predicated region
        $region21: #{tpu_custom_call.1} parent=11 // pred_check
          %p178 = pneg %p120
        $region22: #{tpu_custom_call.1} parent=11 // pred_check_branch
          %180 = sbr.rel (%p178) target = $region24
        $region23: #{tpu_custom_call.1} parent=11 // pred_region
          _
        $region24: #{tpu_custom_call.1} parent=11 // pred_fallthru
          _
      $region12: #{tpu_custom_call.1} parent=5 // pred_fallthru
        _
      %p181 = scmp.lt.s32.totalorder %s17, 8
      // Predicated region
      $region25: #{tpu_custom_call.1} parent=5 // pred_check
        %p182 = pneg %p181
      $region26: #{tpu_custom_call.1} parent=5 // pred_check_branch
        %184 = sbr.rel (%p182) target = $region28
      $region27: #{tpu_custom_call.1} parent=5 // pred_region
        // Predicated region
        $region29: #{tpu_custom_call.1} parent=27 // pred_check
          %p185 = pneg %p51
        $region30: #{tpu_custom_call.1} parent=27 // pred_check_branch
          %187 = sbr.rel (%p185) target = $region32
        $region31: #{tpu_custom_call.1} parent=27 // pred_region
          %s188 = sand.u32 %s41, 1
          %s189 = scalar_lea.sflag [#allocation3], %s188
          %s190 = sand.u32 %s41, 1
          %s191 = smul.addr %s190, 256
          %s192 = scalar_lea.vmem [#allocation2], %s191
          %s193 = smul.u32 8, %s25
          %195 = vsyncadd %s189, 0
          %s196 = smul.addr %s24, 128
          %s197 = sadd.s32 %s193, %s196
          %s198 = smul.addr %s197, 8
          %s199 = scalar_lea.hbm %s0, %s198
          %s200 = sshll.u32 %s199, 4
          %s201 = int_to_ptr.hbm [resolvable:$true] %s200
          %s202 = sshll.u32 %s192, 4
          %s203 = int_to_ptr.vmem [resolvable:$true] %s202
          %208 = dma.hbm_to_vmem [thread:$0]  %s201, 4096, %s203, %s189, 4096, 1024, 64
        $region32: #{tpu_custom_call.1} parent=27 // pred_fallthru
          _
      $region28: #{tpu_custom_call.1} parent=5 // pred_fallthru
        _
      %p209 = scmp.le.s32.totalorder 1, %s17
      %p210 = scmp.lt.s32.totalorder %s17, 9
      %p211 = pnand %p209, %p210
      %p212 = pneg %p211
      // Predicated region
      $region33: #{tpu_custom_call.1} parent=5 // pred_check
        _
      $region34: #{tpu_custom_call.1} parent=5 // pred_check_branch
        %214 = sbr.rel (%p211) target = $region36
      $region35: #{tpu_custom_call.1} parent=5 // pred_region
        %s215 = ssub.s32 %s17, 1
        %s216 = sand.u32 %s44, 1
        %s217 = scalar_lea.sflag [#allocation3], %s216
        %s218 = sand.u32 %s44, 1
        %s219 = smul.addr %s218, 256
        %s220 = scalar_lea.vmem [#allocation2], %s219
        // Predicated region
        $region37: #{tpu_custom_call.1} parent=35 // pred_check
          %p221 = pneg %p57
        $region38: #{tpu_custom_call.1} parent=35 // pred_check_branch
          %223 = sbr.rel (%p221) target = $region40
        $region39: #{tpu_custom_call.1} parent=35 // pred_region
          %225 = dma.done %s217, 4096
        $region40: #{tpu_custom_call.1} parent=35 // pred_fallthru
          _
        // Predicated region
        $region41: #{tpu_custom_call.1} parent=35 // pred_check
          %p226 = pneg %p99
        $region42: #{tpu_custom_call.1} parent=35 // pred_check_branch
          %228 = sbr.rel (%p226) target = $region44
        $region43: #{tpu_custom_call.1} parent=35 // pred_region
          %230 = dma.done [#allocation6], 64
        $region44: #{tpu_custom_call.1} parent=35 // pred_fallthru
          _
        %s231 = sand.u32 %s44, 1
        %s232 = scalar_lea.sflag [#allocation3], %s231
        %s233 = sand.u32 %s44, 1
        %s234 = smul.addr %s233, 256
        %s235 = scalar_lea.vmem [#allocation2], %s234
        %p236 = pneg %p57
        %p237 = pneg %p54
        %p238 = pneg %p78
        %p239 = pneg %p75
        %p240 = pneg %p99
        %p241 = pneg %p96
        %p242 = pneg %p120
        %p243 = pneg %p117
        %p244 = pneg %p148
        %p245 = pneg %p145
        %s246 = sand.u32 %s135, 1
        %s247 = scalar_lea.sflag [#allocation4], %s246
        %s248 = sand.u32 %s135, 1
        %s249 = smul.addr %s248, 32
        %s250 = scalar_lea.vmem [#allocation7], %s249
        %s251 = smul.u32 8, %s27
        %s252 = smul.u32 8, %s27
        %v253 = vld [vmem:[%s220] sm:$0xff]
        %v254 = vld [vmem:[%s220 + $0x8] sm:$0xff]
        %v255 = vld [vmem:[%s220 + $0x10] sm:$0xff]
        %v256 = vld [vmem:[%s220 + $0x18] sm:$0xff]
        %v257 = vld [vmem:[%s220 + $0x20] sm:$0xff]
        %v258 = vld [vmem:[%s220 + $0x28] sm:$0xff]
        %v259 = vld [vmem:[%s220 + $0x30] sm:$0xff]
        %v260 = vld [vmem:[%s220 + $0x38] sm:$0xff]
        %v261 = vld [vmem:[%s220 + $0x40] sm:$0xff]
        %v262 = vld [vmem:[%s220 + $0x48] sm:$0xff]
        %v263 = vld [vmem:[%s220 + $0x50] sm:$0xff]
        %v264 = vld [vmem:[%s220 + $0x58] sm:$0xff]
        %v265 = vld [vmem:[%s220 + $0x60] sm:$0xff]
        %v266 = vld [vmem:[%s220 + $0x68] sm:$0xff]
        %v267 = vld [vmem:[%s220 + $0x70] sm:$0xff]
        %v268 = vld [vmem:[%s220 + $0x78] sm:$0xff]
        %v269 = vld [vmem:[%s220 + $0x80] sm:$0xff]
        %v270 = vld [vmem:[%s220 + $0x88] sm:$0xff]
        %v271 = vld [vmem:[%s220 + $0x90] sm:$0xff]
        %v272 = vld [vmem:[%s220 + $0x98] sm:$0xff]
        %v273 = vld [vmem:[%s220 + $0xa0] sm:$0xff]
        %v274 = vld [vmem:[%s220 + $0xa8] sm:$0xff]
        %v275 = vld [vmem:[%s220 + $0xb0] sm:$0xff]
        %v276 = vld [vmem:[%s220 + $0xb8] sm:$0xff]
        %v277 = vld [vmem:[%s220 + $0xc0] sm:$0xff]
        %v278 = vld [vmem:[%s220 + $0xc8] sm:$0xff]
        %v279 = vld [vmem:[%s220 + $0xd0] sm:$0xff]
        %v280 = vld [vmem:[%s220 + $0xd8] sm:$0xff]
        %v281 = vld [vmem:[%s220 + $0xe0] sm:$0xff]
        %v282 = vld [vmem:[%s220 + $0xe8] sm:$0xff]
        %v283 = vld [vmem:[%s220 + $0xf0] sm:$0xff]
        %v284 = vld [vmem:[%s220 + $0xf8] sm:$0xff]
        %v285 = vrot.slane %v253, 4
        %v286 = vadd.f32 %v253, %v285
        %v287 = vrot.slane %v286, 2
        %v288 = vadd.f32 %v286, %v287
        %v289 = vrot.slane %v288, 1
        %v290 = vadd.f32 %v288, %v289
        %v291 = vrot.slane %v254, 4
        %v292 = vadd.f32 %v254, %v291
        %v293 = vrot.slane %v292, 2
        %v294 = vadd.f32 %v292, %v293
        %v295 = vrot.slane %v294, 1
        %v296 = vadd.f32 %v294, %v295
        %v297 = vrot.slane %v255, 4
        %v298 = vadd.f32 %v255, %v297
        %v299 = vrot.slane %v298, 2
        %v300 = vadd.f32 %v298, %v299
        %v301 = vrot.slane %v300, 1
        %v302 = vadd.f32 %v300, %v301
        %v303 = vrot.slane %v256, 4
        %v304 = vadd.f32 %v256, %v303
        %v305 = vrot.slane %v304, 2
        %v306 = vadd.f32 %v304, %v305
        %v307 = vrot.slane %v306, 1
        %v308 = vadd.f32 %v306, %v307
        %v309 = vrot.slane %v257, 4
        %v310 = vadd.f32 %v257, %v309
        %v311 = vrot.slane %v310, 2
        %v312 = vadd.f32 %v310, %v311
        %v313 = vrot.slane %v312, 1
        %v314 = vadd.f32 %v312, %v313
        %v315 = vrot.slane %v258, 4
        %v316 = vadd.f32 %v258, %v315
        %v317 = vrot.slane %v316, 2
        %v318 = vadd.f32 %v316, %v317
        %v319 = vrot.slane %v318, 1
        %v320 = vadd.f32 %v318, %v319
        %v321 = vrot.slane %v259, 4
        %v322 = vadd.f32 %v259, %v321
        %v323 = vrot.slane %v322, 2
        %v324 = vadd.f32 %v322, %v323
        %v325 = vrot.slane %v324, 1
        %v326 = vadd.f32 %v324, %v325
        %v327 = vrot.slane %v260, 4
        %v328 = vadd.f32 %v260, %v327
        %v329 = vrot.slane %v328, 2
        %v330 = vadd.f32 %v328, %v329
        %v331 = vrot.slane %v330, 1
        %v332 = vadd.f32 %v330, %v331
        %v333 = vrot.slane %v261, 4
        %v334 = vadd.f32 %v261, %v333
        %v335 = vrot.slane %v334, 2
        %v336 = vadd.f32 %v334, %v335
        %v337 = vrot.slane %v336, 1
        %v338 = vadd.f32 %v336, %v337
        %v339 = vrot.slane %v262, 4
        %v340 = vadd.f32 %v262, %v339
        %v341 = vrot.slane %v340, 2
        %v342 = vadd.f32 %v340, %v341
        %v343 = vrot.slane %v342, 1
        %v344 = vadd.f32 %v342, %v343
        %v345 = vrot.slane %v263, 4
        %v346 = vadd.f32 %v263, %v345
        %v347 = vrot.slane %v346, 2
        %v348 = vadd.f32 %v346, %v347
        %v349 = vrot.slane %v348, 1
        %v350 = vadd.f32 %v348, %v349
        %v351 = vrot.slane %v264, 4
        %v352 = vadd.f32 %v264, %v351
        %v353 = vrot.slane %v352, 2
        %v354 = vadd.f32 %v352, %v353
        %v355 = vrot.slane %v354, 1
        %v356 = vadd.f32 %v354, %v355
        %v357 = vrot.slane %v265, 4
        %v358 = vadd.f32 %v265, %v357
        %v359 = vrot.slane %v358, 2
        %v360 = vadd.f32 %v358, %v359
        %v361 = vrot.slane %v360, 1
        %v362 = vadd.f32 %v360, %v361
        %v363 = vrot.slane %v266, 4
        %v364 = vadd.f32 %v266, %v363
        %v365 = vrot.slane %v364, 2
        %v366 = vadd.f32 %v364, %v365
        %v367 = vrot.slane %v366, 1
        %v368 = vadd.f32 %v366, %v367
        %v369 = vrot.slane %v267, 4
        %v370 = vadd.f32 %v267, %v369
        %v371 = vrot.slane %v370, 2
        %v372 = vadd.f32 %v370, %v371
        %v373 = vrot.slane %v372, 1
        %v374 = vadd.f32 %v372, %v373
        %v375 = vrot.slane %v268, 4
        %v376 = vadd.f32 %v268, %v375
        %v377 = vrot.slane %v376, 2
        %v378 = vadd.f32 %v376, %v377
        %v379 = vrot.slane %v378, 1
        %v380 = vadd.f32 %v378, %v379
        %v381 = vrot.slane %v269, 4
        %v382 = vadd.f32 %v269, %v381
        %v383 = vrot.slane %v382, 2
        %v384 = vadd.f32 %v382, %v383
        %v385 = vrot.slane %v384, 1
        %v386 = vadd.f32 %v384, %v385
        %v387 = vrot.slane %v270, 4
        %v388 = vadd.f32 %v270, %v387
        %v389 = vrot.slane %v388, 2
        %v390 = vadd.f32 %v388, %v389
        %v391 = vrot.slane %v390, 1
        %v392 = vadd.f32 %v390, %v391
        %v393 = vrot.slane %v271, 4
        %v394 = vadd.f32 %v271, %v393
        %v395 = vrot.slane %v394, 2
        %v396 = vadd.f32 %v394, %v395
        %v397 = vrot.slane %v396, 1
        %v398 = vadd.f32 %v396, %v397
        %v399 = vrot.slane %v272, 4
        %v400 = vadd.f32 %v272, %v399
        %v401 = vrot.slane %v400, 2
        %v402 = vadd.f32 %v400, %v401
        %v403 = vrot.slane %v402, 1
        %v404 = vadd.f32 %v402, %v403
        %v405 = vrot.slane %v273, 4
        %v406 = vadd.f32 %v273, %v405
        %v407 = vrot.slane %v406, 2
        %v408 = vadd.f32 %v406, %v407
        %v409 = vrot.slane %v408, 1
        %v410 = vadd.f32 %v408, %v409
        %v411 = vrot.slane %v274, 4
        %v412 = vadd.f32 %v274, %v411
        %v413 = vrot.slane %v412, 2
        %v414 = vadd.f32 %v412, %v413
        %v415 = vrot.slane %v414, 1
        %v416 = vadd.f32 %v414, %v415
        %v417 = vrot.slane %v275, 4
        %v418 = vadd.f32 %v275, %v417
        %v419 = vrot.slane %v418, 2
        %v420 = vadd.f32 %v418, %v419
        %v421 = vrot.slane %v420, 1
        %v422 = vadd.f32 %v420, %v421
        %v423 = vrot.slane %v276, 4
        %v424 = vadd.f32 %v276, %v423
        %v425 = vrot.slane %v424, 2
        %v426 = vadd.f32 %v424, %v425
        %v427 = vrot.slane %v426, 1
        %v428 = vadd.f32 %v426, %v427
        %v429 = vrot.slane %v277, 4
        %v430 = vadd.f32 %v277, %v429
        %v431 = vrot.slane %v430, 2
        %v432 = vadd.f32 %v430, %v431
        %v433 = vrot.slane %v432, 1
        %v434 = vadd.f32 %v432, %v433
        %v435 = vrot.slane %v278, 4
        %v436 = vadd.f32 %v278, %v435
        %v437 = vrot.slane %v436, 2
        %v438 = vadd.f32 %v436, %v437
        %v439 = vrot.slane %v438, 1
        %v440 = vadd.f32 %v438, %v439
        %v441 = vrot.slane %v279, 4
        %v442 = vadd.f32 %v279, %v441
        %v443 = vrot.slane %v442, 2
        %v444 = vadd.f32 %v442, %v443
        %v445 = vrot.slane %v444, 1
        %v446 = vadd.f32 %v444, %v445
        %v447 = vrot.slane %v280, 4
        %v448 = vadd.f32 %v280, %v447
        %v449 = vrot.slane %v448, 2
        %v450 = vadd.f32 %v448, %v449
        %v451 = vrot.slane %v450, 1
        %v452 = vadd.f32 %v450, %v451
        %v453 = vrot.slane %v281, 4
        %v454 = vadd.f32 %v281, %v453
        %v455 = vrot.slane %v454, 2
        %v456 = vadd.f32 %v454, %v455
        %v457 = vrot.slane %v456, 1
        %v458 = vadd.f32 %v456, %v457
        %v459 = vrot.slane %v282, 4
        %v460 = vadd.f32 %v282, %v459
        %v461 = vrot.slane %v460, 2
        %v462 = vadd.f32 %v460, %v461
        %v463 = vrot.slane %v462, 1
        %v464 = vadd.f32 %v462, %v463
        %v465 = vrot.slane %v283, 4
        %v466 = vadd.f32 %v283, %v465
        %v467 = vrot.slane %v466, 2
        %v468 = vadd.f32 %v466, %v467
        %v469 = vrot.slane %v468, 1
        %v470 = vadd.f32 %v468, %v469
        %v471 = vrot.slane %v284, 4
        %v472 = vadd.f32 %v284, %v471
        %v473 = vrot.slane %v472, 2
        %v474 = vadd.f32 %v472, %v473
        %v475 = vrot.slane %v474, 1
        %v476 = vadd.f32 %v474, %v475
        %v477 = vmul.f32 %v290, 0.125
        %v478 = vmul.f32 %v296, 0.125
        %v479 = vmul.f32 %v302, 0.125
        %v480 = vmul.f32 %v308, 0.125
        %v481 = vmul.f32 %v314, 0.125
        %v482 = vmul.f32 %v320, 0.125
        %v483 = vmul.f32 %v326, 0.125
        %v484 = vmul.f32 %v332, 0.125
        %v485 = vmul.f32 %v338, 0.125
        %v486 = vmul.f32 %v344, 0.125
        %v487 = vmul.f32 %v350, 0.125
        %v488 = vmul.f32 %v356, 0.125
        %v489 = vmul.f32 %v362, 0.125
        %v490 = vmul.f32 %v368, 0.125
        %v491 = vmul.f32 %v374, 0.125
        %v492 = vmul.f32 %v380, 0.125
        %v493 = vmul.f32 %v386, 0.125
        %v494 = vmul.f32 %v392, 0.125
        %v495 = vmul.f32 %v398, 0.125
        %v496 = vmul.f32 %v404, 0.125
        %v497 = vmul.f32 %v410, 0.125
        %v498 = vmul.f32 %v416, 0.125
        %v499 = vmul.f32 %v422, 0.125
        %v500 = vmul.f32 %v428, 0.125
        %v501 = vmul.f32 %v434, 0.125
        %v502 = vmul.f32 %v440, 0.125
        %v503 = vmul.f32 %v446, 0.125
        %v504 = vmul.f32 %v452, 0.125
        %v505 = vmul.f32 %v458, 0.125
        %v506 = vmul.f32 %v464, 0.125
        %v507 = vmul.f32 %v470, 0.125
        %v508 = vmul.f32 %v476, 0.125
        %v509 = vrot.slane %v253, 4
        %v510 = vmax.f32 %v253, %v509
        %v511 = vrot.slane %v510, 2
        %v512 = vmax.f32 %v510, %v511
        %v513 = vrot.slane %v512, 1
        %v514 = vmax.f32 %v512, %v513
        %v515 = vrot.slane %v254, 4
        %v516 = vmax.f32 %v254, %v515
        %v517 = vrot.slane %v516, 2
        %v518 = vmax.f32 %v516, %v517
        %v519 = vrot.slane %v518, 1
        %v520 = vmax.f32 %v518, %v519
        %v521 = vrot.slane %v255, 4
        %v522 = vmax.f32 %v255, %v521
        %v523 = vrot.slane %v522, 2
        %v524 = vmax.f32 %v522, %v523
        %v525 = vrot.slane %v524, 1
        %v526 = vmax.f32 %v524, %v525
        %v527 = vrot.slane %v256, 4
        %v528 = vmax.f32 %v256, %v527
        %v529 = vrot.slane %v528, 2
        %v530 = vmax.f32 %v528, %v529
        %v531 = vrot.slane %v530, 1
        %v532 = vmax.f32 %v530, %v531
        %v533 = vrot.slane %v257, 4
        %v534 = vmax.f32 %v257, %v533
        %v535 = vrot.slane %v534, 2
        %v536 = vmax.f32 %v534, %v535
        %v537 = vrot.slane %v536, 1
        %v538 = vmax.f32 %v536, %v537
        %v539 = vrot.slane %v258, 4
        %v540 = vmax.f32 %v258, %v539
        %v541 = vrot.slane %v540, 2
        %v542 = vmax.f32 %v540, %v541
        %v543 = vrot.slane %v542, 1
        %v544 = vmax.f32 %v542, %v543
        %v545 = vrot.slane %v259, 4
        %v546 = vmax.f32 %v259, %v545
        %v547 = vrot.slane %v546, 2
        %v548 = vmax.f32 %v546, %v547
        %v549 = vrot.slane %v548, 1
        %v550 = vmax.f32 %v548, %v549
        %v551 = vrot.slane %v260, 4
        %v552 = vmax.f32 %v260, %v551
        %v553 = vrot.slane %v552, 2
        %v554 = vmax.f32 %v552, %v553
        %v555 = vrot.slane %v554, 1
        %v556 = vmax.f32 %v554, %v555
        %v557 = vrot.slane %v261, 4
        %v558 = vmax.f32 %v261, %v557
        %v559 = vrot.slane %v558, 2
        %v560 = vmax.f32 %v558, %v559
        %v561 = vrot.slane %v560, 1
        %v562 = vmax.f32 %v560, %v561
        %v563 = vrot.slane %v262, 4
        %v564 = vmax.f32 %v262, %v563
        %v565 = vrot.slane %v564, 2
        %v566 = vmax.f32 %v564, %v565
        %v567 = vrot.slane %v566, 1
        %v568 = vmax.f32 %v566, %v567
        %v569 = vrot.slane %v263, 4
        %v570 = vmax.f32 %v263, %v569
        %v571 = vrot.slane %v570, 2
        %v572 = vmax.f32 %v570, %v571
        %v573 = vrot.slane %v572, 1
        %v574 = vmax.f32 %v572, %v573
        %v575 = vrot.slane %v264, 4
        %v576 = vmax.f32 %v264, %v575
        %v577 = vrot.slane %v576, 2
        %v578 = vmax.f32 %v576, %v577
        %v579 = vrot.slane %v578, 1
        %v580 = vmax.f32 %v578, %v579
        %v581 = vrot.slane %v265, 4
        %v582 = vmax.f32 %v265, %v581
        %v583 = vrot.slane %v582, 2
        %v584 = vmax.f32 %v582, %v583
        %v585 = vrot.slane %v584, 1
        %v586 = vmax.f32 %v584, %v585
        %v587 = vrot.slane %v266, 4
        %v588 = vmax.f32 %v266, %v587
        %v589 = vrot.slane %v588, 2
        %v590 = vmax.f32 %v588, %v589
        %v591 = vrot.slane %v590, 1
        %v592 = vmax.f32 %v590, %v591
        %v593 = vrot.slane %v267, 4
        %v594 = vmax.f32 %v267, %v593
        %v595 = vrot.slane %v594, 2
        %v596 = vmax.f32 %v594, %v595
        %v597 = vrot.slane %v596, 1
        %v598 = vmax.f32 %v596, %v597
        %v599 = vrot.slane %v268, 4
        %v600 = vmax.f32 %v268, %v599
        %v601 = vrot.slane %v600, 2
        %v602 = vmax.f32 %v600, %v601
        %v603 = vrot.slane %v602, 1
        %v604 = vmax.f32 %v602, %v603
        %v605 = vrot.slane %v269, 4
        %v606 = vmax.f32 %v269, %v605
        %v607 = vrot.slane %v606, 2
        %v608 = vmax.f32 %v606, %v607
        %v609 = vrot.slane %v608, 1
        %v610 = vmax.f32 %v608, %v609
        %v611 = vrot.slane %v270, 4
        %v612 = vmax.f32 %v270, %v611
        %v613 = vrot.slane %v612, 2
        %v614 = vmax.f32 %v612, %v613
        %v615 = vrot.slane %v614, 1
        %v616 = vmax.f32 %v614, %v615
        %v617 = vrot.slane %v271, 4
        %v618 = vmax.f32 %v271, %v617
        %v619 = vrot.slane %v618, 2
        %v620 = vmax.f32 %v618, %v619
        %v621 = vrot.slane %v620, 1
        %v622 = vmax.f32 %v620, %v621
        %v623 = vrot.slane %v272, 4
        %v624 = vmax.f32 %v272, %v623
        %v625 = vrot.slane %v624, 2
        %v626 = vmax.f32 %v624, %v625
        %v627 = vrot.slane %v626, 1
        %v628 = vmax.f32 %v626, %v627
        %v629 = vrot.slane %v273, 4
        %v630 = vmax.f32 %v273, %v629
        %v631 = vrot.slane %v630, 2
        %v632 = vmax.f32 %v630, %v631
        %v633 = vrot.slane %v632, 1
        %v634 = vmax.f32 %v632, %v633
        %v635 = vrot.slane %v274, 4
        %v636 = vmax.f32 %v274, %v635
        %v637 = vrot.slane %v636, 2
        %v638 = vmax.f32 %v636, %v637
        %v639 = vrot.slane %v638, 1
        %v640 = vmax.f32 %v638, %v639
        %v641 = vrot.slane %v275, 4
        %v642 = vmax.f32 %v275, %v641
        %v643 = vrot.slane %v642, 2
        %v644 = vmax.f32 %v642, %v643
        %v645 = vrot.slane %v644, 1
        %v646 = vmax.f32 %v644, %v645
        %v647 = vrot.slane %v276, 4
        %v648 = vmax.f32 %v276, %v647
        %v649 = vrot.slane %v648, 2
        %v650 = vmax.f32 %v648, %v649
        %v651 = vrot.slane %v650, 1
        %v652 = vmax.f32 %v650, %v651
        %v653 = vrot.slane %v277, 4
        %v654 = vmax.f32 %v277, %v653
        %v655 = vrot.slane %v654, 2
        %v656 = vmax.f32 %v654, %v655
        %v657 = vrot.slane %v656, 1
        %v658 = vmax.f32 %v656, %v657
        %v659 = vrot.slane %v278, 4
        %v660 = vmax.f32 %v278, %v659
        %v661 = vrot.slane %v660, 2
        %v662 = vmax.f32 %v660, %v661
        %v663 = vrot.slane %v662, 1
        %v664 = vmax.f32 %v662, %v663
        %v665 = vrot.slane %v279, 4
        %v666 = vmax.f32 %v279, %v665
        %v667 = vrot.slane %v666, 2
        %v668 = vmax.f32 %v666, %v667
        %v669 = vrot.slane %v668, 1
        %v670 = vmax.f32 %v668, %v669
        %v671 = vrot.slane %v280, 4
        %v672 = vmax.f32 %v280, %v671
        %v673 = vrot.slane %v672, 2
        %v674 = vmax.f32 %v672, %v673
        %v675 = vrot.slane %v674, 1
        %v676 = vmax.f32 %v674, %v675
        %v677 = vrot.slane %v281, 4
        %v678 = vmax.f32 %v281, %v677
        %v679 = vrot.slane %v678, 2
        %v680 = vmax.f32 %v678, %v679
        %v681 = vrot.slane %v680, 1
        %v682 = vmax.f32 %v680, %v681
        %v683 = vrot.slane %v282, 4
        %v684 = vmax.f32 %v282, %v683
        %v685 = vrot.slane %v684, 2
        %v686 = vmax.f32 %v684, %v685
        %v687 = vrot.slane %v686, 1
        %v688 = vmax.f32 %v686, %v687
        %v689 = vrot.slane %v283, 4
        %v690 = vmax.f32 %v283, %v689
        %v691 = vrot.slane %v690, 2
        %v692 = vmax.f32 %v690, %v691
        %v693 = vrot.slane %v692, 1
        %v694 = vmax.f32 %v692, %v693
        %v695 = vrot.slane %v284, 4
        %v696 = vmax.f32 %v284, %v695
        %v697 = vrot.slane %v696, 2
        %v698 = vmax.f32 %v696, %v697
        %v699 = vrot.slane %v698, 1
        %v700 = vmax.f32 %v698, %v699
        %v701 = vld [vmem:[%s1] sm:$0xf]
        %v702 = vld [vmem:[#allocation5] sm:$0xf]
        %vm735 = vcmask 1041409
        %v736 = vsel %vm735, %v562, %v514
        %vm737 = vcmask 1042434
        %v738 = vsel %vm737, %v610, %v736
        %vm739 = vcmask 1043459
        %v740 = vsel %vm739, %v658, %v738
        %v741 = vsel %vm735, %v568, %v520
        %v742 = vsel %vm737, %v616, %v741
        %v743 = vsel %vm739, %v664, %v742
        %v744 = vsel %vm735, %v574, %v526
        %v745 = vsel %vm737, %v622, %v744
        %v746 = vsel %vm739, %v670, %v745
        %v747 = vsel %vm735, %v580, %v532
        %v748 = vsel %vm737, %v628, %v747
        %v749 = vsel %vm739, %v676, %v748
        %v750 = vsel %vm735, %v586, %v538
        %v751 = vsel %vm737, %v634, %v750
        %v752 = vsel %vm739, %v682, %v751
        %v753 = vsel %vm735, %v592, %v544
        %v754 = vsel %vm737, %v640, %v753
        %v755 = vsel %vm739, %v688, %v754
        %v756 = vsel %vm735, %v598, %v550
        %v757 = vsel %vm737, %v646, %v756
        %v758 = vsel %vm739, %v694, %v757
        %v759 = vsel %vm735, %v604, %v556
        %v760 = vsel %vm737, %v652, %v759
        %v761 = vsel %vm739, %v700, %v760
        %vm762 = vcmask 31744
        %v764 = vsel %vm762, %v702, 0
        %vm766 = vcmask 1043456
        %v767 = vsel %vm766, %v740, 0
        %v769 = vsel %vm766, %v743, 0
        %v771 = vsel %vm766, %v746, 0
        %v773 = vsel %vm766, %v749, 0
        %v775 = vsel %vm766, %v752, 0
        %v777 = vsel %vm766, %v755, 0
        %v779 = vsel %vm766, %v758, 0
        %v781 = vsel %vm766, %v761, 0
        %783 = vmatpush.msra.mxu0 0.0
        %784 = vmatpush.msra.mxu0 0.0
        %785 = vmatpush.msra.mxu0 0.0
        %786 = vmatpush.msra.mxu0 0.0
        %787 = vmatpush.msra.mxu0 0.0
        %788 = vmatpush.msra.mxu0 0.0
        %789 = vmatpush.msra.mxu0 0.0
        %790 = vmatpush.msra.mxu0 0.0
        %791 = vmatpush.msra.mxu0 0.0
        %792 = vmatpush.msra.mxu0 0.0
        %793 = vmatpush.msra.mxu0 0.0
        %794 = vmatpush.msra.mxu0 0.0
        %795 = vmatpush.msra.mxu0 0.0
        %796 = vmatpush.msra.mxu0 0.0
        %797 = vmatpush.msra.mxu0 0.0
        %798 = vmatpush.msra.mxu0 %v767
        %799 = vmatmul.f32.gmra.mxu0 %v764
        %v800 = vpop.f32.mrf.mxu0
        %v801 = vadd.f32 0.0, %v800
        %802 = vdwg.mxu0
        %803 = vmatpush.msra.mxu0 0.0
        %804 = vmatpush.msra.mxu0 0.0
        %805 = vmatpush.msra.mxu0 0.0
        %806 = vmatpush.msra.mxu0 0.0
        %807 = vmatpush.msra.mxu0 0.0
        %808 = vmatpush.msra.mxu0 0.0
        %809 = vmatpush.msra.mxu0 0.0
        %810 = vmatpush.msra.mxu0 0.0
        %811 = vmatpush.msra.mxu0 0.0
        %812 = vmatpush.msra.mxu0 0.0
        %813 = vmatpush.msra.mxu0 0.0
        %814 = vmatpush.msra.mxu0 0.0
        %815 = vmatpush.msra.mxu0 0.0
        %816 = vmatpush.msra.mxu0 0.0
        %817 = vmatpush.msra.mxu0 0.0
        %818 = vmatpush.msra.mxu0 %v769
        %819 = vmatmul.f32.gmra.mxu0 %v764
        %v820 = vpop.f32.mrf.mxu0
        %v821 = vadd.f32 0.0, %v820
        %822 = vdwg.mxu0
        %823 = vmatpush.msra.mxu0 0.0
        %824 = vmatpush.msra.mxu0 0.0
        %825 = vmatpush.msra.mxu0 0.0
        %826 = vmatpush.msra.mxu0 0.0
        %827 = vmatpush.msra.mxu0 0.0
        %828 = vmatpush.msra.mxu0 0.0
        %829 = vmatpush.msra.mxu0 0.0
        %830 = vmatpush.msra.mxu0 0.0
        %831 = vmatpush.msra.mxu0 0.0
        %832 = vmatpush.msra.mxu0 0.0
        %833 = vmatpush.msra.mxu0 0.0
        %834 = vmatpush.msra.mxu0 0.0
        %835 = vmatpush.msra.mxu0 0.0
        %836 = vmatpush.msra.mxu0 0.0
        %837 = vmatpush.msra.mxu0 0.0
        %838 = vmatpush.msra.mxu0 %v771
        %839 = vmatmul.f32.gmra.mxu0 %v764
        %v840 = vpop.f32.mrf.mxu0
        %v841 = vadd.f32 0.0, %v840
        %842 = vdwg.mxu0
        %843 = vmatpush.msra.mxu0 0.0
        %844 = vmatpush.msra.mxu0 0.0
        %845 = vmatpush.msra.mxu0 0.0
        %846 = vmatpush.msra.mxu0 0.0
        %847 = vmatpush.msra.mxu0 0.0
        %848 = vmatpush.msra.mxu0 0.0
        %849 = vmatpush.msra.mxu0 0.0
        %850 = vmatpush.msra.mxu0 0.0
        %851 = vmatpush.msra.mxu0 0.0
        %852 = vmatpush.msra.mxu0 0.0
        %853 = vmatpush.msra.mxu0 0.0
        %854 = vmatpush.msra.mxu0 0.0
        %855 = vmatpush.msra.mxu0 0.0
        %856 = vmatpush.msra.mxu0 0.0
        %857 = vmatpush.msra.mxu0 0.0
        %858 = vmatpush.msra.mxu0 %v773
        %859 = vmatmul.f32.gmra.mxu0 %v764
        %v860 = vpop.f32.mrf.mxu0
        %v861 = vadd.f32 0.0, %v860
        %862 = vdwg.mxu0
        %863 = vmatpush.msra.mxu0 0.0
        %864 = vmatpush.msra.mxu0 0.0
        %865 = vmatpush.msra.mxu0 0.0
        %866 = vmatpush.msra.mxu0 0.0
        %867 = vmatpush.msra.mxu0 0.0
        %868 = vmatpush.msra.mxu0 0.0
        %869 = vmatpush.msra.mxu0 0.0
        %870 = vmatpush.msra.mxu0 0.0
        %871 = vmatpush.msra.mxu0 0.0
        %872 = vmatpush.msra.mxu0 0.0
        %873 = vmatpush.msra.mxu0 0.0
        %874 = vmatpush.msra.mxu0 0.0
        %875 = vmatpush.msra.mxu0 0.0
        %876 = vmatpush.msra.mxu0 0.0
        %877 = vmatpush.msra.mxu0 0.0
        %878 = vmatpush.msra.mxu0 %v775
        %879 = vmatmul.f32.gmra.mxu0 %v764
        %v880 = vpop.f32.mrf.mxu0
        %v881 = vadd.f32 0.0, %v880
        %882 = vdwg.mxu0
        %883 = vmatpush.msra.mxu0 0.0
        %884 = vmatpush.msra.mxu0 0.0
        %885 = vmatpush.msra.mxu0 0.0
        %886 = vmatpush.msra.mxu0 0.0
        %887 = vmatpush.msra.mxu0 0.0
        %888 = vmatpush.msra.mxu0 0.0
        %889 = vmatpush.msra.mxu0 0.0
        %890 = vmatpush.msra.mxu0 0.0
        %891 = vmatpush.msra.mxu0 0.0
        %892 = vmatpush.msra.mxu0 0.0
        %893 = vmatpush.msra.mxu0 0.0
        %894 = vmatpush.msra.mxu0 0.0
        %895 = vmatpush.msra.mxu0 0.0
        %896 = vmatpush.msra.mxu0 0.0
        %897 = vmatpush.msra.mxu0 0.0
        %898 = vmatpush.msra.mxu0 %v777
        %899 = vmatmul.f32.gmra.mxu0 %v764
        %v900 = vpop.f32.mrf.mxu0
        %v901 = vadd.f32 0.0, %v900
        %902 = vdwg.mxu0
        %903 = vmatpush.msra.mxu0 0.0
        %904 = vmatpush.msra.mxu0 0.0
        %905 = vmatpush.msra.mxu0 0.0
        %906 = vmatpush.msra.mxu0 0.0
        %907 = vmatpush.msra.mxu0 0.0
        %908 = vmatpush.msra.mxu0 0.0
        %909 = vmatpush.msra.mxu0 0.0
        %910 = vmatpush.msra.mxu0 0.0
        %911 = vmatpush.msra.mxu0 0.0
        %912 = vmatpush.msra.mxu0 0.0
        %913 = vmatpush.msra.mxu0 0.0
        %914 = vmatpush.msra.mxu0 0.0
        %915 = vmatpush.msra.mxu0 0.0
        %916 = vmatpush.msra.mxu0 0.0
        %917 = vmatpush.msra.mxu0 0.0
        %918 = vmatpush.msra.mxu0 %v779
        %919 = vmatmul.f32.gmra.mxu0 %v764
        %v920 = vpop.f32.mrf.mxu0
        %v921 = vadd.f32 0.0, %v920
        %922 = vdwg.mxu0
        %923 = vmatpush.msra.mxu0 0.0
        %924 = vmatpush.msra.mxu0 0.0
        %925 = vmatpush.msra.mxu0 0.0
        %926 = vmatpush.msra.mxu0 0.0
        %927 = vmatpush.msra.mxu0 0.0
        %928 = vmatpush.msra.mxu0 0.0
        %929 = vmatpush.msra.mxu0 0.0
        %930 = vmatpush.msra.mxu0 0.0
        %931 = vmatpush.msra.mxu0 0.0
        %932 = vmatpush.msra.mxu0 0.0
        %933 = vmatpush.msra.mxu0 0.0
        %934 = vmatpush.msra.mxu0 0.0
        %935 = vmatpush.msra.mxu0 0.0
        %936 = vmatpush.msra.mxu0 0.0
        %937 = vmatpush.msra.mxu0 0.0
        %938 = vmatpush.msra.mxu0 %v781
        %939 = vmatmul.f32.gmra.mxu0 %v764
        %v940 = vpop.f32.mrf.mxu0
        %v941 = vadd.f32 0.0, %v940
        %942 = vdwg.mxu0
        %v975 = vsel %vm735, %v485, %v477
        %v976 = vsel %vm737, %v493, %v975
        %v977 = vsel %vm739, %v501, %v976
        %v978 = vsel %vm735, %v486, %v478
        %v979 = vsel %vm737, %v494, %v978
        %v980 = vsel %vm739, %v502, %v979
        %v981 = vsel %vm735, %v487, %v479
        %v982 = vsel %vm737, %v495, %v981
        %v983 = vsel %vm739, %v503, %v982
        %v984 = vsel %vm735, %v488, %v480
        %v985 = vsel %vm737, %v496, %v984
        %v986 = vsel %vm739, %v504, %v985
        %v987 = vsel %vm735, %v489, %v481
        %v988 = vsel %vm737, %v497, %v987
        %v989 = vsel %vm739, %v505, %v988
        %v990 = vsel %vm735, %v490, %v482
        %v991 = vsel %vm737, %v498, %v990
        %v992 = vsel %vm739, %v506, %v991
        %v993 = vsel %vm735, %v491, %v483
        %v994 = vsel %vm737, %v499, %v993
        %v995 = vsel %vm739, %v507, %v994
        %v996 = vsel %vm735, %v492, %v484
        %v997 = vsel %vm737, %v500, %v996
        %v998 = vsel %vm739, %v508, %v997
        %v1000 = vsel %vm762, %v701, 0
        %v1002 = vsel %vm766, %v977, 0
        %v1004 = vsel %vm766, %v980, 0
        %v1006 = vsel %vm766, %v983, 0
        %v1008 = vsel %vm766, %v986, 0
        %v1010 = vsel %vm766, %v989, 0
        %v1012 = vsel %vm766, %v992, 0
        %v1014 = vsel %vm766, %v995, 0
        %v1016 = vsel %vm766, %v998, 0
        %1018 = vmatpush.msra.mxu0 0.0
        %1019 = vmatpush.msra.mxu0 0.0
        %1020 = vmatpush.msra.mxu0 0.0
        %1021 = vmatpush.msra.mxu0 0.0
        %1022 = vmatpush.msra.mxu0 0.0
        %1023 = vmatpush.msra.mxu0 0.0
        %1024 = vmatpush.msra.mxu0 0.0
        %1025 = vmatpush.msra.mxu0 0.0
        %1026 = vmatpush.msra.mxu0 0.0
        %1027 = vmatpush.msra.mxu0 0.0
        %1028 = vmatpush.msra.mxu0 0.0
        %1029 = vmatpush.msra.mxu0 0.0
        %1030 = vmatpush.msra.mxu0 0.0
        %1031 = vmatpush.msra.mxu0 0.0
        %1032 = vmatpush.msra.mxu0 0.0
        %1033 = vmatpush.msra.mxu0 %v1002
        %1034 = vmatmul.f32.gmra.mxu0 %v1000
        %v1035 = vpop.f32.mrf.mxu0
        %v1036 = vadd.f32 %v801, %v1035
        %1037 = vdwg.mxu0
        %1038 = vmatpush.msra.mxu0 0.0
        %1039 = vmatpush.msra.mxu0 0.0
        %1040 = vmatpush.msra.mxu0 0.0
        %1041 = vmatpush.msra.mxu0 0.0
        %1042 = vmatpush.msra.mxu0 0.0
        %1043 = vmatpush.msra.mxu0 0.0
        %1044 = vmatpush.msra.mxu0 0.0
        %1045 = vmatpush.msra.mxu0 0.0
        %1046 = vmatpush.msra.mxu0 0.0
        %1047 = vmatpush.msra.mxu0 0.0
        %1048 = vmatpush.msra.mxu0 0.0
        %1049 = vmatpush.msra.mxu0 0.0
        %1050 = vmatpush.msra.mxu0 0.0
        %1051 = vmatpush.msra.mxu0 0.0
        %1052 = vmatpush.msra.mxu0 0.0
        %1053 = vmatpush.msra.mxu0 %v1004
        %1054 = vmatmul.f32.gmra.mxu0 %v1000
        %v1055 = vpop.f32.mrf.mxu0
        %v1056 = vadd.f32 %v821, %v1055
        %1057 = vdwg.mxu0
        %1058 = vmatpush.msra.mxu0 0.0
        %1059 = vmatpush.msra.mxu0 0.0
        %1060 = vmatpush.msra.mxu0 0.0
        %1061 = vmatpush.msra.mxu0 0.0
        %1062 = vmatpush.msra.mxu0 0.0
        %1063 = vmatpush.msra.mxu0 0.0
        %1064 = vmatpush.msra.mxu0 0.0
        %1065 = vmatpush.msra.mxu0 0.0
        %1066 = vmatpush.msra.mxu0 0.0
        %1067 = vmatpush.msra.mxu0 0.0
        %1068 = vmatpush.msra.mxu0 0.0
        %1069 = vmatpush.msra.mxu0 0.0
        %1070 = vmatpush.msra.mxu0 0.0
        %1071 = vmatpush.msra.mxu0 0.0
        %1072 = vmatpush.msra.mxu0 0.0
        %1073 = vmatpush.msra.mxu0 %v1006
        %1074 = vmatmul.f32.gmra.mxu0 %v1000
        %v1075 = vpop.f32.mrf.mxu0
        %v1076 = vadd.f32 %v841, %v1075
        %1077 = vdwg.mxu0
        %1078 = vmatpush.msra.mxu0 0.0
        %1079 = vmatpush.msra.mxu0 0.0
        %1080 = vmatpush.msra.mxu0 0.0
        %1081 = vmatpush.msra.mxu0 0.0
        %1082 = vmatpush.msra.mxu0 0.0
        %1083 = vmatpush.msra.mxu0 0.0
        %1084 = vmatpush.msra.mxu0 0.0
        %1085 = vmatpush.msra.mxu0 0.0
        %1086 = vmatpush.msra.mxu0 0.0
        %1087 = vmatpush.msra.mxu0 0.0
        %1088 = vmatpush.msra.mxu0 0.0
        %1089 = vmatpush.msra.mxu0 0.0
        %1090 = vmatpush.msra.mxu0 0.0
        %1091 = vmatpush.msra.mxu0 0.0
        %1092 = vmatpush.msra.mxu0 0.0
        %1093 = vmatpush.msra.mxu0 %v1008
        %1094 = vmatmul.f32.gmra.mxu0 %v1000
        %v1095 = vpop.f32.mrf.mxu0
        %v1096 = vadd.f32 %v861, %v1095
        %1097 = vdwg.mxu0
        %1098 = vmatpush.msra.mxu0 0.0
        %1099 = vmatpush.msra.mxu0 0.0
        %1100 = vmatpush.msra.mxu0 0.0
        %1101 = vmatpush.msra.mxu0 0.0
        %1102 = vmatpush.msra.mxu0 0.0
        %1103 = vmatpush.msra.mxu0 0.0
        %1104 = vmatpush.msra.mxu0 0.0
        %1105 = vmatpush.msra.mxu0 0.0
        %1106 = vmatpush.msra.mxu0 0.0
        %1107 = vmatpush.msra.mxu0 0.0
        %1108 = vmatpush.msra.mxu0 0.0
        %1109 = vmatpush.msra.mxu0 0.0
        %1110 = vmatpush.msra.mxu0 0.0
        %1111 = vmatpush.msra.mxu0 0.0
        %1112 = vmatpush.msra.mxu0 0.0
        %1113 = vmatpush.msra.mxu0 %v1010
        %1114 = vmatmul.f32.gmra.mxu0 %v1000
        %v1115 = vpop.f32.mrf.mxu0
        %v1116 = vadd.f32 %v881, %v1115
        %1117 = vdwg.mxu0
        %1118 = vmatpush.msra.mxu0 0.0
        %1119 = vmatpush.msra.mxu0 0.0
        %1120 = vmatpush.msra.mxu0 0.0
        %1121 = vmatpush.msra.mxu0 0.0
        %1122 = vmatpush.msra.mxu0 0.0
        %1123 = vmatpush.msra.mxu0 0.0
        %1124 = vmatpush.msra.mxu0 0.0
        %1125 = vmatpush.msra.mxu0 0.0
        %1126 = vmatpush.msra.mxu0 0.0
        %1127 = vmatpush.msra.mxu0 0.0
        %1128 = vmatpush.msra.mxu0 0.0
        %1129 = vmatpush.msra.mxu0 0.0
        %1130 = vmatpush.msra.mxu0 0.0
        %1131 = vmatpush.msra.mxu0 0.0
        %1132 = vmatpush.msra.mxu0 0.0
        %1133 = vmatpush.msra.mxu0 %v1012
        %1134 = vmatmul.f32.gmra.mxu0 %v1000
        %v1135 = vpop.f32.mrf.mxu0
        %v1136 = vadd.f32 %v901, %v1135
        %1137 = vdwg.mxu0
        %1138 = vmatpush.msra.mxu0 0.0
        %1139 = vmatpush.msra.mxu0 0.0
        %1140 = vmatpush.msra.mxu0 0.0
        %1141 = vmatpush.msra.mxu0 0.0
        %1142 = vmatpush.msra.mxu0 0.0
        %1143 = vmatpush.msra.mxu0 0.0
        %1144 = vmatpush.msra.mxu0 0.0
        %1145 = vmatpush.msra.mxu0 0.0
        %1146 = vmatpush.msra.mxu0 0.0
        %1147 = vmatpush.msra.mxu0 0.0
        %1148 = vmatpush.msra.mxu0 0.0
        %1149 = vmatpush.msra.mxu0 0.0
        %1150 = vmatpush.msra.mxu0 0.0
        %1151 = vmatpush.msra.mxu0 0.0
        %1152 = vmatpush.msra.mxu0 0.0
        %1153 = vmatpush.msra.mxu0 %v1014
        %1154 = vmatmul.f32.gmra.mxu0 %v1000
        %v1155 = vpop.f32.mrf.mxu0
        %v1156 = vadd.f32 %v921, %v1155
        %1157 = vdwg.mxu0
        %1158 = vmatpush.msra.mxu0 0.0
        %1159 = vmatpush.msra.mxu0 0.0
        %1160 = vmatpush.msra.mxu0 0.0
        %1161 = vmatpush.msra.mxu0 0.0
        %1162 = vmatpush.msra.mxu0 0.0
        %1163 = vmatpush.msra.mxu0 0.0
        %1164 = vmatpush.msra.mxu0 0.0
        %1165 = vmatpush.msra.mxu0 0.0
        %1166 = vmatpush.msra.mxu0 0.0
        %1167 = vmatpush.msra.mxu0 0.0
        %1168 = vmatpush.msra.mxu0 0.0
        %1169 = vmatpush.msra.mxu0 0.0
        %1170 = vmatpush.msra.mxu0 0.0
        %1171 = vmatpush.msra.mxu0 0.0
        %1172 = vmatpush.msra.mxu0 0.0
        %1173 = vmatpush.msra.mxu0 %v1016
        %1174 = vmatmul.f32.gmra.mxu0 %v1000
        %v1175 = vpop.f32.mrf.mxu0
        %v1176 = vadd.f32 %v941, %v1175
        %1177 = vdwg.mxu0
        %v1178 = vld [vmem:[%s3] sm:$0xf]
        %1180 = vset.pattern.permute.xlu0 0
        %1181 = vperm.xlu0 %1180, %v1178
        %v1182 = vpop.permute.xlu0 %1181
        %v1184 = vadd.f32 %v1036, %v1182
        %v1185 = vadd.f32 %v1056, %v1182
        %v1186 = vadd.f32 %v1076, %v1182
        %v1187 = vadd.f32 %v1096, %v1182
        %v1188 = vadd.f32 %v1116, %v1182
        %v1189 = vadd.f32 %v1136, %v1182
        %v1190 = vadd.f32 %v1156, %v1182
        %v1191 = vadd.f32 %v1176, %v1182
        %v1200 = vrot.slane %v1185, 4
        %v1201 = vrot.slane %v1187, 4
        %v1202 = vrot.slane %v1189, 4
        %v1203 = vrot.slane %v1191, 4
        %v1204 = vsel %vm766, %v1184, %v1200
        %v1205 = vsel %vm766, %v1186, %v1201
        %v1206 = vsel %vm766, %v1188, %v1202
        %v1207 = vsel %vm766, %v1190, %v1203
        %1212 = vst [vmem:[%s250] sm:$0xff] %v1204
        %1213 = vst [vmem:[%s250 + $0x8] sm:$0xff] %v1205
        %1214 = vst [vmem:[%s250 + $0x10] sm:$0xff] %v1206
        %1215 = vst [vmem:[%s250 + $0x18] sm:$0xff] %v1207
        %s1216 = sand.u32 %s135, 1
        %s1217 = scalar_lea.sflag [#allocation4], %s1216
        %s1218 = sand.u32 %s135, 1
        %s1219 = smul.addr %s1218, 32
        %s1220 = scalar_lea.vmem [#allocation7], %s1219
        // Predicated region
        $region45: #{tpu_custom_call.1} parent=35 // pred_check
          %p1221 = pneg %p145
        $region46: #{tpu_custom_call.1} parent=35 // pred_check_branch
          %1223 = sbr.rel (%p1221) target = $region48
        $region47: #{tpu_custom_call.1} parent=35 // pred_region
          %s1224 = smul.u32 8, %s27
          %1226 = vsyncadd %s1217, 0
          %s1227 = smul.addr %s26, 32
          %s1228 = sadd.s32 %s1224, %s1227
          %s1229 = smul.addr %s1228, 4
          %s1230 = scalar_lea.hbm %s4, %s1229
          %s1232 = sshll.u32 %s1220, 4
          %s1233 = int_to_ptr.vmem [resolvable:$true] %s1232
          %s1234 = sshll.u32 %s1230, 4
          %s1235 = int_to_ptr.hbm [resolvable:$true] %s1234
          %1237 = dma.vmem_to_hbm [thread:$0]  %s1233, 512, %s1235, %s1217
        $region48: #{tpu_custom_call.1} parent=35 // pred_fallthru
          _
      $region36: #{tpu_custom_call.1} parent=5 // pred_fallthru
        _
      %p1238 = scmp.le.s32.totalorder 2, %s17
      // Predicated region
      $region49: #{tpu_custom_call.1} parent=5 // pred_check
        %p1239 = pneg %p1238
      $region50: #{tpu_custom_call.1} parent=5 // pred_check_branch
        %1241 = sbr.rel (%p1239) target = $region52
      $region51: #{tpu_custom_call.1} parent=5 // pred_region
        %s1242 = ssub.s32 %s17, 2
        // Predicated region
        $region53: #{tpu_custom_call.1} parent=51 // pred_check
          %p1243 = pneg %p151
        $region54: #{tpu_custom_call.1} parent=51 // pred_check_branch
          %1245 = sbr.rel (%p1243) target = $region56
        $region55: #{tpu_custom_call.1} parent=51 // pred_region
          %s1246 = sand.u32 %s136, 1
          %s1247 = scalar_lea.sflag [#allocation4], %s1246
          %s1248 = sand.u32 %s136, 1
          %s1249 = smul.addr %s1248, 32
          %s1250 = scalar_lea.vmem [#allocation7], %s1249
          %1252 = dma.done %s1247, 512
        $region56: #{tpu_custom_call.1} parent=51 // pred_fallthru
          _
      $region52: #{tpu_custom_call.1} parent=5 // pred_fallthru
        _
    $region6: #{tpu_custom_call.1} parent=1 // loop_footer
      %s21 = sadd.s32 1, %s17
    $region7: #{tpu_custom_call.1} parent=1 // loop_footer_branch
      %16 = sbr.rel target = $region3
    $region8: #{tpu_custom_call.1} parent=1 // loop_exit
      _
    %1253 = vsyncpa [#allocation3], 1
    %s1254 = scalar_lea.sflag [#allocation3], 1
    %1255 = vsyncpa %s1254, 1
    %1256 = vsyncpa [#allocation6], 1
    %1257 = vsyncpa [#allocation4], 1
    %s1258 = scalar_lea.sflag [#allocation4], 1
    %1259 = vsyncpa %s1258, 1

</llo_original>
